<compile_context>
chip_gen: v5e
topology: v5e:2x2
jax: 0.10.0
libtpu: 0.0.40
codegen_flags: <defaults>
</compile_context>

<pallas_src>
import jax
import jax.numpy as jnp
from jax.experimental import pallas as pl
from jax.experimental.pallas import tpu as pltpu

# ---------------------------------------------------------------------------
# Tuning knobs
# ---------------------------------------------------------------------------
# Below this, a pallas_call dispatch (several us) dominates the copy time and
# adds latency without adding bandwidth; reference capture is exact anyway.
_DEFAULT_MIN_COPY_BYTES = 256 * 1024

# Split the copy into 2 row-shards (leading "parallel" grid axis) once the
# array is large enough that each shard's DMA time dwarfs per-step overhead;
# on v7x this puts one shard on each TensorCore.
_SHARD_SPLIT_BYTES = 4 * 1024 * 1024

# Keep 2 DMAs in flight per shard for very large captures so DMA issue latency
# hides under the previous chunk's transfer time.
_INFLIGHT_SPLIT_BYTES = 16 * 1024 * 1024


def _make_dma_copy_kernel(rows, chunks_per_shard, chunk_rows, whole):
    """Builds an HBM->HBM copy kernel.

    whole=True : one DMA of the full input ref into the full output ref.
    whole=False: each grid step ("shard") issues `chunks_per_shard` DMAs of
                 `chunk_rows` leading-axis rows each, keeps them all in flight,
                 then waits.  Chunk starts are clamped to `rows - chunk_rows`,
                 so when rows does not divide evenly the tail chunks re-copy a
                 few already-copied rows; both writers write identical bytes,
                 so the overlap is benign.
    """

    def kernel(x_hbm, o_hbm, sems):
        if whole:
            cp = pltpu.make_async_copy(x_hbm, o_hbm, sems.at[0])
            cp.start()
            cp.wait()
            return

        shard = pl.program_id(0)
        copies = []
        for c in range(chunks_per_shard):
            start = (shard * chunks_per_shard + c) * chunk_rows
            start = jnp.minimum(start, rows - chunk_rows)
            cp = pltpu.make_async_copy(
                x_hbm.at[pl.ds(start, chunk_rows)],
                o_hbm.at[pl.ds(start, chunk_rows)],
                sems.at[c],
            )
            cp.start()
            copies.append(cp)
        for cp in copies:
            cp.wait()

    return kernel


def _dma_capture(x):
    """Bit-exact device copy of `x` via chunked HBM->HBM DMAs."""
    shape = x.shape
    itemsize = jnp.dtype(x.dtype).itemsize
    nbytes = x.size * itemsize

    num_shards = 2 if nbytes >= _SHARD_SPLIT_BYTES else 1
    chunks_per_shard = 2 if nbytes >= _INFLIGHT_SPLIT_BYTES else 1
    splits = num_shards * chunks_per_shard

    view = x
    if splits > 1:
        # Need >= `splits` rows on the leading axis to cut DMA chunks from.
        lead, k = 1, 0
        while k < len(shape) and lead < splits:
            lead *= shape[k]
            k += 1
        if lead < splits:
            # Not enough rows to split (pathological for >=4 MiB arrays):
            # fall back to a single whole-array DMA.
            num_shards, chunks_per_shard, splits = 1, 1, 1
        elif k != 1:
            rest = 1
            for d in shape[k:]:
                rest *= d
            # Collapsing contiguous axis groups of a row-major array is a
            # bitcast under jit, not a copy.
            view = x.reshape(lead, rest)

    whole = splits == 1
    rows = view.shape[0] if view.ndim > 0 else 1
    chunk_rows = -(-rows // splits)  # ceil-div; == rows when splits == 1

    out = pl.pallas_call(
        _make_dma_copy_kernel(rows, chunks_per_shard, chunk_rows, whole),
        out_shape=jax.ShapeDtypeStruct(view.shape, view.dtype),
        grid_spec=pltpu.PrefetchScalarGridSpec(
            num_scalar_prefetch=0,
            grid=(num_shards,),
            in_specs=[pl.BlockSpec(memory_space=pl.ANY)],   # raw HBM ref
            out_specs=pl.BlockSpec(memory_space=pl.ANY),    # raw HBM ref
            scratch_shapes=[pltpu.SemaphoreType.DMA((chunks_per_shard,))],
        ),
        compiler_params=pltpu.CompilerParams(
            dimension_semantics=("parallel",),  # shards across both v7x TCs
        ),
        cost_estimate=pl.CostEstimate(
            flops=0, transcendentals=0, bytes_accessed=2 * nbytes),
    )(view)

    return out.reshape(shape) if view.shape != shape else out


# jit so any shape-exposing reshape is a bitcast (not an eager device copy)
# and repeated captures of same-shaped activations reuse one executable.
_dma_capture_jit = jax.jit(_dma_capture)


def pallas_capture(x, min_copy_bytes=_DEFAULT_MIN_COPY_BYTES):
    """Capture an array; arrays >= min_copy_bytes are device-copied via DMA."""
    if not isinstance(x, jnp.ndarray):
        return x
    if x.ndim == 0 or x.size == 0:
        # 0-d / empty: reference capture (exact -- JAX arrays are immutable).
        return x
    if x.size * jnp.dtype(x.dtype).itemsize < min_copy_bytes:
        # Reference capture: exact for immutable, non-donated JAX arrays and
        # cheaper than a kernel dispatch at these sizes.  Callers that donate
        # their activation buffers should pass min_copy_bytes=0.
        return x
    return _dma_capture_jit(x)


class InputCaptureModule:
    """JAX/Pallas analogue of neural_compressor's InputCaptureModule.

    __call__(*args, **kwargs) captures the incoming tensor (or kwargs dict)
    into `data_pairs` and returns None, matching the PyTorch forward().
    Tensors at or above `min_copy_bytes` are captured as real device copies
    through the HBM->HBM DMA kernel; smaller ones by reference.
    """

    def __init__(self, min_copy_bytes=_DEFAULT_MIN_COPY_BYTES) -> None:
        self.data_pairs = []
        self.device = "tpu"
        self.min_copy_bytes = min_copy_bytes

    def _capture(self, v):
        if isinstance(v, jnp.ndarray):
            return pallas_capture(v, self.min_copy_bytes)
        return v

    def __call__(self, *args, **kwargs):
        if kwargs and len(args) == 0:
            self.data_pairs.append({k: self._capture(v) for k, v in kwargs.items()})
        elif args and len(args) == 1:
            self.data_pairs.append(self._capture(args[0]))
        else:
            # TODO(synk): original logs via `logger.error`; no logger here.
            print("Handle cases where input data is neither a Tensor nor a dict")
        return None  # forward() returns None in the original module


if __name__ == "__main__":
    key = jax.random.PRNGKey(0)
    k1, k2 = jax.random.split(key, 2)

    # Small NCHW-style input consistent with typical conv-layer captures.
    x = jax.random.normal(k1, (2, 4, 16, 16), dtype=jnp.float32)
    x_bf16 = (x * 0.5).astype(jnp.bfloat16)  # exercise a 16-bit dtype

    # min_copy_bytes=0 forces every capture through the Pallas DMA kernel so
    # the small demo inputs exercise it (production default is 256 KiB).
    mod = InputCaptureModule(min_copy_bytes=0)

    mod(x)                                              # positional-tensor path
    mod(hidden_states=x * 2.0, attention_mask=None)     # kwargs path
    mod(x_bf16)                                         # sub-32-bit dtype path

    c0 = jax.block_until_ready(mod.data_pairs[0])
    c1 = jax.block_until_ready(mod.data_pairs[1]["hidden_states"])
    c2 = jax.block_until_ready(mod.data_pairs[2])

    assert c0.shape == x.shape and c0.dtype == x.dtype
    assert bool(jnp.all(c0 == x))
    assert bool(jnp.all(c1 == x * 2.0))
    assert mod.data_pairs[1]["attention_mask"] is None
    assert c2.dtype == jnp.bfloat16 and c2.shape == x.shape
    assert bool(jnp.all(c2 == x_bf16))

    # Directly exercise the sharded DMA path (>= _SHARD_SPLIT_BYTES => 2 shards
    # on the "parallel" grid axis with dynamically-offset chunk DMAs).
    big = jax.random.normal(k2, (2048, 512), dtype=jnp.float32)  # 4 MiB
    big_copy = jax.block_until_ready(pallas_capture(big, min_copy_bytes=0))
    assert big_copy.shape == big.shape and bool(jnp.all(big_copy == big))

    print("KERNEL_OK")
</pallas_src>

<mosaic_0001>
module attributes {stable_mosaic.version = 11 : i64} {
  func.func @kernel(%arg0: i32, %arg1: memref<2x4x16x16xf32, #tpu.memory_space<any>>, %arg2: memref<2x4x16x16xf32, #tpu.memory_space<any>>, %arg3: memref<1x!tpu.dma_semaphore, #tpu.memory_space<semaphore_mem>>) attributes {dimension_semantics = [#tpu.dimension_semantics<parallel>], iteration_bounds = array<i64: 1>, scalar_prefetch = 0 : i64, scratch_operands = 1 : i64, tpu.core_type = #tpu.core_type<tc>, window_params = [{}, {}]} {
    %c0_i32 = arith.constant 0 : i32
    %0 = tpu.memref_slice %arg3[%c0_i32] : memref<1x!tpu.dma_semaphore, #tpu.memory_space<semaphore_mem>> -> memref<1x!tpu.dma_semaphore, #tpu.memory_space<semaphore_mem>>
    %1 = tpu.memref_squeeze %0 : memref<1x!tpu.dma_semaphore, #tpu.memory_space<semaphore_mem>> -> memref<!tpu.dma_semaphore, #tpu.memory_space<semaphore_mem>>
    tpu.enqueue_dma source(%arg1 : memref<2x4x16x16xf32, #tpu.memory_space<any>>) target(%arg2 : memref<2x4x16x16xf32, #tpu.memory_space<any>>) target_semaphore(%1 : memref<!tpu.dma_semaphore, #tpu.memory_space<semaphore_mem>>)
    %c0_i32_0 = arith.constant 0 : i32
    %2 = tpu.memref_slice %arg3[%c0_i32_0] : memref<1x!tpu.dma_semaphore, #tpu.memory_space<semaphore_mem>> -> memref<1x!tpu.dma_semaphore, #tpu.memory_space<semaphore_mem>>
    %3 = tpu.memref_squeeze %2 : memref<1x!tpu.dma_semaphore, #tpu.memory_space<semaphore_mem>> -> memref<!tpu.dma_semaphore, #tpu.memory_space<semaphore_mem>>
    tpu.wait_dma2 semaphore(%3 : memref<!tpu.dma_semaphore, #tpu.memory_space<semaphore_mem>>) src(%arg1 : memref<2x4x16x16xf32, #tpu.memory_space<any>>) dst(%arg2 : memref<2x4x16x16xf32, #tpu.memory_space<any>>)
    return
  }
}

</mosaic_0001>

<llo_original>
// kernel: _dma_capture.1
$region0: #{_dma_capture.1}
  #allocation0 [shape = 'u32[]', space=smem, size = 0x4, offset = 0x4, fixed_abs, tag = 'smem constant byte address 0x4 - core index']
  #allocation1 [shape = 'u32[72,128]{1,0:T(1,128)}', space=vmem, size = 0x9000, scoped, tag = 'internal scratch']
  #allocation2 [shape = 's32[1]{0}', space=sflag, size = 0x4, scoped, tag = 'scratch operand']
  #allocation3 [shape = 's32[]', space=sflag, size = 0x4, offset = 0, fixed_abs, tag = 'sflag constant byte address 0x0 - dummy sync flag']
  #allocation4 [shape = 'u32[0]{0}', space=smem, size = 0, offset = 0, fixed_abs, tag = 'smem constant byte address 0x0 - null']
  %s0 = inlined_call_operand.hbm [shape: f32[2,4,16,16], index: 0, kind: input, shape index: {}]
  %s1 = inlined_call_operand.hbm [shape: f32[2,4,16,16], index: 1, kind: output, shape index: {}]
  %s2 = sld [smem:[#allocation0]]
  $region2: #{_dma_capture.1} parent=0
    _
  %s4 = ssub.s32 1, %s2
  %s5 = scalar_select 0, %s4, %s2
  %s7 = sshll.u32 1, 14
  %s8 = sxor.u32 4294967295, %s7
  %s10 = sshll.u32 %s0, 4
  %s11 = int_to_ptr.hbm [resolvable:$true] %s10
  %s12 = sshll.u32 %s1, 4
  %s13 = int_to_ptr.hbm [resolvable:$true] %s12
  %16 = dma.general %s11, 2048, %s13, [#allocation2], [#allocation3], [#allocation4], 0, 0
  %s17 = smul.u32 2, 4
  %s18 = smul.u32 %s17, 16
  %s19 = smul.u32 %s18, 1
  %s20 = sshll.u32 %s19, 4
  %21 = dma.done [#allocation2], %s20
  %22 = vsyncmov [#allocation2]
  %s23 = vpop.sfrf %22
  %p24 = scmp.eq.s32.totalorder %s23, 0
  %p25 = pneg %p24
  %27 = shalt.err (%p25)

</llo_original>
